<compile_context>
chip_gen: v5e
topology: v5e:2x2
jax: 0.10.0
libtpu: 0.0.40
codegen_flags: <defaults>
</compile_context>

<pallas_src>
import jax
import jax.numpy as jnp
from jax import lax
from jax.experimental import pallas as pl
from jax.experimental.pallas import tpu as pltpu

N = 5                              # n_s = n_a = 5 in the module
BATCH_SIZE = 2
SEQUENCE_LENGTH = N * (N - 1)      # 20  (entries of the DAG edge vector)
VOCAB_SIZE = 2                     # edge values live in {0, 1}


def _flow_logprob_kernel(z_rep_ref, base_ref, lp_ref):
    """Fused one_hot(z) * base_log_probs on a lane-collapsed [B, S*V] layout.

    z_rep_ref : [B, S*V] int32   -- prior_z repeated V times along lanes
    base_ref  : [1, S*V] float32 -- base_log_probs flattened (interleaved s,v)
    lp_ref    : [B, S*V] float32 -- single output (logprobs == probs)
    """
    z = z_rep_ref[...]                                         # [B, S*V] i32
    base = base_ref[...]                                       # [1, S*V] f32
    # Lane parity recovers the vocab index v of each collapsed lane.
    lane = lax.broadcasted_iota(jnp.int32, z.shape, dimension=1)
    v_idx = lane % VOCAB_SIZE
    # one_hot(z)[b, s, v] == (z[b, s] == v); multiply-by-one-hot == select.
    lp_ref[...] = jnp.where(z == v_idx, base, jnp.float32(0.0))


def flow_logprobs(prior_z_int, base_log_probs):
    """logprobs = one_hot(prior_z) * base_log_probs, computed lane-dense."""
    B, S = prior_z_int.shape
    S2, V = base_log_probs.shape
    assert S2 == S
    # Layout plumbing (tiny): repeat each edge index across its V lanes and
    # flatten base so the kernel sees a dense last axis of S*V lanes.
    z_rep = jnp.repeat(prior_z_int, V, axis=1)                 # [B, S*V]
    base_flat = base_log_probs.reshape(1, S * V)               # [1, S*V]

    lp_flat = pl.pallas_call(
        _flow_logprob_kernel,
        out_shape=jax.ShapeDtypeStruct((B, S * V), jnp.float32),
        # Whole-array VMEM residency; no grid, no index_map plumbing.
        in_specs=[
            pl.BlockSpec(memory_space=pltpu.MemorySpace.VMEM),
            pl.BlockSpec(memory_space=pltpu.MemorySpace.VMEM),
        ],
        out_specs=pl.BlockSpec(memory_space=pltpu.MemorySpace.VMEM),
    )(z_rep, base_flat)

    return lp_flat.reshape(B, S, V)


def graph_flows_v1_forward(key):
    k_z, k_base = jax.random.split(key)

    # sample_uniform_dag: uniform {0,1} of shape [batch, N*(N-1)]
    # (np.random.randint replaced with deterministic jax.random)
    prior_z_int = jax.random.randint(
        k_z, (BATCH_SIZE, SEQUENCE_LENGTH), 0, 2, dtype=jnp.int32)

    # TODO(synk): DiscreteAutoregressiveFlow / DiscreteBipartiteFlow /
    # DiscreteAutoFlowModel are not defined in the source module; the flow is
    # treated as the identity transform (xs = one_hot(prior_z)), and the
    # one_hot itself is fused into the Pallas kernel below.

    # base_log_probs = torch.randn(sequence_length, vocab_size)
    base_log_probs = jax.random.normal(
        k_base, (SEQUENCE_LENGTH, VOCAB_SIZE), dtype=jnp.float32)

    # Hot path in Pallas: logprobs = one_hot(prior_z) * base_log_probs.
    logprobs = flow_logprobs(prior_z_int, base_log_probs)
    # Module sets base_probs = base_log_probs, so probs is the identical
    # tensor; no second kernel output / no duplicate store or DMA.
    probs = logprobs

    # The module's forward returns this constant adjacency matrix.
    A = jnp.array(
        [[0, 0, 0, 0, 0],
         [1, 0, 0, 0, 0],
         [1, 0, 0, 0, 0],
         [0, 1, 1, 0, 0],
         [1, 0, 0, 0, 0]], dtype=jnp.int32)
    return A, logprobs, probs


if __name__ == "__main__":
    key = jax.random.PRNGKey(0)
    A, logprobs, probs = graph_flows_v1_forward(key)
    jax.block_until_ready((A, logprobs, probs))

    assert A.shape == (N, N)
    assert logprobs.shape == (BATCH_SIZE, SEQUENCE_LENGTH, VOCAB_SIZE)
    assert probs.shape == (BATCH_SIZE, SEQUENCE_LENGTH, VOCAB_SIZE)

    # Sanity check against the plain-JAX reference of the module's math.
    k_z, k_base = jax.random.split(key)
    z_ref = jax.random.randint(
        k_z, (BATCH_SIZE, SEQUENCE_LENGTH), 0, 2, dtype=jnp.int32)
    base_ref = jax.random.normal(
        k_base, (SEQUENCE_LENGTH, VOCAB_SIZE), dtype=jnp.float32)
    xs_ref = jax.nn.one_hot(z_ref, VOCAB_SIZE, dtype=jnp.float32)
    lp_ref = xs_ref * base_ref[None, :, :]
    assert jnp.allclose(logprobs, lp_ref), "kernel mismatch vs reference"
    assert jnp.allclose(probs, lp_ref), "kernel mismatch vs reference"

    print("KERNEL_OK")
</pallas_src>

<mosaic_0001>
module attributes {stable_mosaic.version = 11 : i64} {
  func.func @_flow_logprob_kernel(%arg0: memref<2x40xi32, #tpu.memory_space<vmem>>, %arg1: memref<1x40xf32, #tpu.memory_space<vmem>>, %arg2: memref<2x40xf32, #tpu.memory_space<vmem>>) attributes {dimension_semantics = [], scalar_prefetch = 0 : i64, scratch_operands = 0 : i64, tpu.core_type = #tpu.core_type<tc>} {
    %c0 = arith.constant 0 : index
    %c0_0 = arith.constant 0 : index
    %0 = vector.load %arg0[%c0, %c0_0] : memref<2x40xi32, #tpu.memory_space<vmem>>, vector<2x40xi32>
    %c0_1 = arith.constant 0 : index
    %c0_2 = arith.constant 0 : index
    %1 = vector.load %arg1[%c0_1, %c0_2] : memref<1x40xf32, #tpu.memory_space<vmem>>, vector<1x40xf32>
    %2 = tpu.iota {dimensions = array<i32: 1>} : vector<2x40xi32>
    %c2_i32 = arith.constant 2 : i32
    %c0_i32 = arith.constant 0 : i32
    %3 = arith.cmpi eq, %c2_i32, %c0_i32 : i32
    %c1_i32 = arith.constant 1 : i32
    %4 = arith.select %3, %c1_i32, %c2_i32 : i32
    %5 = vector.broadcast %4 : i32 to vector<2x40xi32>
    %6 = arith.remsi %2, %5 : vector<2x40xi32>
    %c0_i32_3 = arith.constant 0 : i32
    %7 = vector.broadcast %c0_i32_3 : i32 to vector<2x40xi32>
    %8 = arith.cmpi ne, %6, %7 : vector<2x40xi32>
    %c0_i32_4 = arith.constant 0 : i32
    %9 = vector.broadcast %c0_i32_4 : i32 to vector<2x40xi32>
    %10 = arith.cmpi slt, %6, %9 : vector<2x40xi32>
    %c0_i32_5 = arith.constant 0 : i32
    %11 = arith.cmpi slt, %4, %c0_i32_5 : i32
    %12 = vector.broadcast %11 : i1 to vector<2x40xi1>
    %13 = vector.broadcast %12 : vector<2x40xi1> to vector<2x40xi1>
    %14 = arith.xori %10, %13 : vector<2x40xi1>
    %15 = arith.andi %14, %8 : vector<2x40xi1>
    %16 = vector.broadcast %4 : i32 to vector<2x40xi32>
    %17 = arith.addi %6, %16 : vector<2x40xi32>
    %18 = arith.select %15, %17, %6 : vector<2x40xi1>, vector<2x40xi32>
    %19 = arith.cmpi eq, %0, %18 : vector<2x40xi32>
    %cst = arith.constant 0.000000e+00 : f32
    %20 = vector.shape_cast %1 : vector<1x40xf32> to vector<1x40xf32>
    %21 = vector.broadcast %20 : vector<1x40xf32> to vector<2x40xf32>
    %22 = vector.broadcast %cst : f32 to vector<2x40xf32>
    %23 = arith.select %19, %21, %22 : vector<2x40xi1>, vector<2x40xf32>
    %c0_6 = arith.constant 0 : index
    %c0_7 = arith.constant 0 : index
    %24 = vector.load %arg2[%c0_6, %c0_7] : memref<2x40xf32, #tpu.memory_space<vmem>>, vector<2x40xf32>
    tpu.vector_store %arg2[%c0_6, %c0_7], %23 {strides = array<i32>} : memref<2x40xf32, #tpu.memory_space<vmem>>, vector<2x40xf32>,
    return
  }
}

</mosaic_0001>

<llo_original>
// kernel: tpu_custom_call.1
$region0: #{tpu_custom_call.1}
  #allocation0 [shape = 'u32[]', space=smem, size = 0x4, offset = 0x4, fixed_abs, tag = 'smem constant byte address 0x4 - core index']
  #allocation1 [shape = 'u32[72,128]{1,0:T(1,128)}', space=vmem, size = 0x9000, scoped, tag = 'internal scratch']
  %s0 = inlined_call_operand.hbm [shape: s32[2,40], index: 0, kind: input, shape index: {}]
  %s1 = inlined_call_operand.hbm [shape: f32[1,40], index: 1, kind: input, shape index: {}]
  %s2 = inlined_call_operand.hbm [shape: f32[2,40], index: 2, kind: output, shape index: {}]
  %s3 = sld [smem:[#allocation0]]
  $region26: #{tpu_custom_call.1} parent=0
    _
  %s5 = ssub.s32 1, %s3
  %s6 = scalar_select 0, %s5, %s3
  $region1: #{tpu_custom_call.1} parent=0
    #allocation2 [shape = 'u8[1024]{0}', space=vmem, size = 0x400, scoped, tag = 'input window, operand 0, single buffered']
    #allocation3 [shape = 's32[1]{0}', space=sflag, size = 0x4, scoped, tag = 'scoped memory for tpu_custom_call.1']
    #allocation4 [shape = 's32[1]{0}', space=sflag, size = 0x4, scoped, tag = 'scoped memory for tpu_custom_call.1']
    #allocation5 [shape = 'u8[512]{0}', space=vmem, size = 0x400, scoped, tag = 'input window, operand 1, single buffered']
    #allocation6 [shape = 's32[1]{0}', space=sflag, size = 0x4, scoped, tag = 'scoped memory for tpu_custom_call.1']
    #allocation7 [shape = 'u8[1024]{0}', space=vmem, size = 0x400, scoped, tag = 'output window, operand 0, single buffered']
    %7 = vsyncpa [#allocation3], 0
    %8 = vsyncpa [#allocation6], 0
    %9 = vsyncpa [#allocation4], 0
    // Predicated region
    $region2: #{tpu_custom_call.1} parent=1 // pred_check
      _
    $region3: #{tpu_custom_call.1} parent=1 // pred_check_branch
      %11 = sbr.rel (0) target = $region5
    $region4: #{tpu_custom_call.1} parent=1 // pred_region
      %13 = vsyncadd [#allocation3], 0
      %s15 = sshll.u32 %s0, 4
      %s16 = int_to_ptr.hbm [resolvable:$true] %s15
      %s17 = sshll.u32 [#allocation2], 4
      %s18 = int_to_ptr.vmem [resolvable:$true] %s17
      %20 = dma.hbm_to_vmem [thread:$0]  %s16, 32, %s18, [#allocation3]
    $region5: #{tpu_custom_call.1} parent=1 // pred_fallthru
      _
    // Predicated region
    $region6: #{tpu_custom_call.1} parent=1 // pred_check
      _
    $region7: #{tpu_custom_call.1} parent=1 // pred_check_branch
      %22 = sbr.rel (0) target = $region9
    $region8: #{tpu_custom_call.1} parent=1 // pred_region
      %24 = vsyncadd [#allocation6], 0
      %s26 = sshll.u32 %s1, 4
      %s27 = int_to_ptr.hbm [resolvable:$true] %s26
      %s28 = sshll.u32 [#allocation5], 4
      %s29 = int_to_ptr.vmem [resolvable:$true] %s28
      %31 = dma.hbm_to_vmem [thread:$0]  %s27, 16, %s29, [#allocation6]
    $region9: #{tpu_custom_call.1} parent=1 // pred_fallthru
      _
    // Predicated region
    $region10: #{tpu_custom_call.1} parent=1 // pred_check
      _
    $region11: #{tpu_custom_call.1} parent=1 // pred_check_branch
      %33 = sbr.rel (0) target = $region13
    $region12: #{tpu_custom_call.1} parent=1 // pred_region
      %35 = dma.done [#allocation3], 32
    $region13: #{tpu_custom_call.1} parent=1 // pred_fallthru
      _
    // Predicated region
    $region14: #{tpu_custom_call.1} parent=1 // pred_check
      _
    $region15: #{tpu_custom_call.1} parent=1 // pred_check_branch
      %37 = sbr.rel (0) target = $region17
    $region16: #{tpu_custom_call.1} parent=1 // pred_region
      %39 = dma.done [#allocation6], 16
    $region17: #{tpu_custom_call.1} parent=1 // pred_fallthru
      _
    %v40 = vld [vmem:[#allocation2] sm:$0x3]
    %v41 = vld [vmem:[#allocation5] sm:$0x1]
    %v42 = vlaneseq
    %v43 = vand.u32 %v42, 127
    %vm44 = vcmp.lt.s32.totalorder %v43, 0
    %v45 = vsub.s32 0, %v43
    %v46 = vsel %vm44, %v45, %v43
    %v47 = vshrl.u32 %v46, 1
    %v48 = vand.u32 %v46, 1
    %v49 = vsub.s32 0, %v48
    %v50 = vsel %vm44, %v49, %v48
    %vm51 = vcmp.ne.s32.totalorder %v50, 0
    %vm52 = vcmp.lt.s32.totalorder %v50, 0
    %vm53 = vmand %vm52, %vm51
    %v54 = vadd.s32 %v50, 2
    %v55 = vsel %vm53, %v54, %v50
    %vm56 = vcmp.eq.s32.totalorder %v40, %v55
    %v58 = vperm.slane %v41, 0
    %v60 = vsel %vm56, %v58, 0.0
    %vm61 = vcmask 320512
    %62 = vst.msk [vmem:[#allocation7] sm:$0x3] %vm61, %v60
    // Predicated region
    $region18: #{tpu_custom_call.1} parent=1 // pred_check
      _
    $region19: #{tpu_custom_call.1} parent=1 // pred_check_branch
      %64 = sbr.rel (0) target = $region21
    $region20: #{tpu_custom_call.1} parent=1 // pred_region
      %66 = vsyncadd [#allocation4], 0
      %s68 = sshll.u32 [#allocation7], 4
      %s69 = int_to_ptr.vmem [resolvable:$true] %s68
      %s70 = sshll.u32 %s2, 4
      %s71 = int_to_ptr.hbm [resolvable:$true] %s70
      %73 = dma.vmem_to_hbm [thread:$0]  %s69, 32, %s71, [#allocation4]
    $region21: #{tpu_custom_call.1} parent=1 // pred_fallthru
      _
    // Predicated region
    $region22: #{tpu_custom_call.1} parent=1 // pred_check
      _
    $region23: #{tpu_custom_call.1} parent=1 // pred_check_branch
      %75 = sbr.rel (0) target = $region25
    $region24: #{tpu_custom_call.1} parent=1 // pred_region
      %77 = dma.done [#allocation4], 32
    $region25: #{tpu_custom_call.1} parent=1 // pred_fallthru
      _
    %78 = vsyncpa [#allocation3], 1
    %79 = vsyncpa [#allocation6], 1
    %80 = vsyncpa [#allocation4], 1

</llo_original>
